<compile_context>
chip_gen: v7x
topology: tpu7x:2x2x1
jax: 0.10.0
libtpu: 0.0.40
codegen_flags: <defaults>
</compile_context>

<pallas_src>
import functools

import jax
import jax.numpy as jnp
from jax.experimental import pallas as pl
from jax.experimental.pallas import tpu as pltpu

_I32_SENTINEL = 2147483647  # jnp.iinfo(jnp.int32).max; > any valid key by construction


def _round_up(x, m):
    return ((x + m - 1) // m) * m


# ---------------------------------------------------------------------------
# Fused streaming top-r kernel (primary path)
# ---------------------------------------------------------------------------
def _fused_topk_kernel(t_ref, r_ref, out_ref, run_ref, *, top_r, n_train, tn, d):
    """One grid step: (tq, d) +/-1 test codes x (tn, d) 0/1 train codes.

    Emits int32 keys  key = (hamming_proxy + d) * n_train + train_index
    (smaller == nearer, ties -> lower train index) and merges the tile into the
    persistent running top-r buffer `run_ref` (tq, rw).  Only the last train
    tile writes the (tq, rw) result to HBM.
    """
    j = pl.program_id(1)

    @pl.when(j == 0)
    def _init():
        run_ref[...] = jnp.full(run_ref.shape, _I32_SENTINEL, dtype=jnp.int32)

    # Hamming-order proxy: single MXU matmul, contraction on the (small) bit
    # axis of BOTH operands — no wrapper-side transpose of the train codes.
    proxy = jax.lax.dot_general(
        t_ref[...], r_ref[...],
        dimension_numbers=(((1,), (1,)), ((), ())),
        preferred_element_type=jnp.float32)            # (tq, tn) exact small ints
    proxy = proxy.astype(jnp.int32)                    # in [-d, d]

    # Combined (distance, train-index) key; padded train columns get a sentinel
    # so they can never enter the top-r.
    col = jax.lax.broadcasted_iota(jnp.int32, proxy.shape, 1) + j * tn
    key = (proxy + d) * n_train + col
    key = jnp.where(col < n_train, key, _I32_SENTINEL)

    run = run_ref[...]                                 # (tq, rw) running best keys
    acc = jnp.full(run.shape, _I32_SENTINEL, dtype=jnp.int32)
    out_col = jax.lax.broadcasted_iota(jnp.int32, run.shape, 1)

    def merge_step(r_i, carry):
        run_c, tile_c, acc_c = carry
        m = jnp.minimum(jnp.min(run_c, axis=1, keepdims=True),
                        jnp.min(tile_c, axis=1, keepdims=True))      # (tq, 1)
        acc_c = jnp.where(out_col == r_i, m, acc_c)
        # Keys embed the global train index, so they are unique per row and
        # removal-by-equality never drops a distinct candidate.
        run_c = jnp.where(run_c == m, _I32_SENTINEL, run_c)
        tile_c = jnp.where(tile_c == m, _I32_SENTINEL, tile_c)
        return run_c, tile_c, acc_c

    # TODO(synk): for very large top_r, replace the O(top_r * tn) min-extraction
    # with a cheaper threshold/partial-sort merge.
    if top_r <= 32:
        carry = (run, key, acc)
        for r_i in range(top_r):                       # unrolled, static trip count
            carry = merge_step(r_i, carry)
        acc = carry[2]
    else:
        _, _, acc = jax.lax.fori_loop(0, top_r, merge_step, (run, key, acc))

    run_ref[...] = acc

    @pl.when(j == pl.num_programs(1) - 1)
    def _finalize():
        out_ref[...] = acc


def fused_hamming_topr_keys(test_pm1, train01, top_r, *, tile_q=256, tile_n=2048):
    """Per-row top-r (distance, index) keys, shape (Q, top_r), int32.

    test_pm1 : (Q, D) bf16 codes in {-1, +1}  (t' = 1 - 2*test_bin)
    train01  : (N, D) bf16 codes in {0, 1}

    key = (hamming(q, n) - popcount(test_bin[q]) + D) * N + n, so
    top_idx = key % N and ties break lower-train-index-first.
    Requires (2*D + 1) * N < 2**31 (checked by the caller).
    """
    q, d = test_pm1.shape
    n, d2 = train01.shape
    assert d == d2

    tq = min(tile_q, _round_up(q, 16))     # bf16 sublane packing
    tn = min(tile_n, _round_up(n, 128))    # lane-dense train tiles
    q_pad = _round_up(q, tq)
    n_pad = _round_up(n, tn)
    if q_pad != q:
        test_pm1 = jnp.pad(test_pm1, ((0, q_pad - q), (0, 0)))
    if n_pad != n:
        train01 = jnp.pad(train01, ((0, n_pad - n), (0, 0)))

    rw = _round_up(max(top_r, 1), 128)     # lane-dense (unmasked) output stores
    grid = (q_pad // tq, n_pad // tn)

    kernel = functools.partial(_fused_topk_kernel,
                               top_r=top_r, n_train=n, tn=tn, d=d)
    cost = pl.CostEstimate(
        flops=2 * q_pad * n_pad * d,
        transcendentals=0,
        bytes_accessed=q_pad * d * 2 + grid[0] * n_pad * d * 2 + q_pad * rw * 4)

    keys = pl.pallas_call(
        kernel,
        out_shape=jax.ShapeDtypeStruct((q_pad, rw), jnp.int32),
        grid_spec=pltpu.PrefetchScalarGridSpec(
            num_scalar_prefetch=0,
            grid=grid,
            in_specs=[
                pl.BlockSpec((tq, d), lambda i, j: (i, 0)),   # test tile: fixed in j
                pl.BlockSpec((tn, d), lambda i, j: (j, 0)),   # train tile streams in j
            ],
            out_specs=pl.BlockSpec((tq, rw), lambda i, j: (i, 0)),
            scratch_shapes=[pltpu.VMEM((tq, rw), jnp.int32)]),
        compiler_params=pltpu.CompilerParams(
            dimension_semantics=("parallel", "arbitrary"),
            vmem_limit_bytes=32 * 1024 * 1024),
        cost_estimate=cost,
    )(test_pm1, train01)

    return keys[:q, :top_r]


# ---------------------------------------------------------------------------
# Dense proxy kernel (fallback only, when the int32 key would overflow)
# ---------------------------------------------------------------------------
def _dense_proxy_kernel(t_ref, r_ref, o_ref, *, n_train, tn, d):
    j = pl.program_id(1)
    proxy = jax.lax.dot_general(
        t_ref[...], r_ref[...],
        dimension_numbers=(((1,), (1,)), ((), ())),
        preferred_element_type=jnp.float32).astype(jnp.int32)
    col = jax.lax.broadcasted_iota(jnp.int32, proxy.shape, 1) + j * tn
    # Padded train columns get d+1 (> any real proxy) so they sort last.
    o_ref[...] = jnp.where(col < n_train, proxy, d + 1)


def dense_hamming_proxy(test_pm1, train01, *, tile_q=512, tile_n=2048):
    """Order-equivalent int32 Hamming proxy scores, shape (Q_pad, N_pad)."""
    q, d = test_pm1.shape
    n, d2 = train01.shape
    assert d == d2

    tq = min(tile_q, _round_up(q, 16))
    tn = min(tile_n, _round_up(n, 128))
    q_pad = _round_up(q, tq)
    n_pad = _round_up(n, tn)
    if q_pad != q:
        test_pm1 = jnp.pad(test_pm1, ((0, q_pad - q), (0, 0)))
    if n_pad != n:
        train01 = jnp.pad(train01, ((0, n_pad - n), (0, 0)))

    grid = (q_pad // tq, n_pad // tn)
    kernel = functools.partial(_dense_proxy_kernel, n_train=n, tn=tn, d=d)
    cost = pl.CostEstimate(
        flops=2 * q_pad * n_pad * d,
        transcendentals=0,
        bytes_accessed=q_pad * d * 2 + grid[0] * n_pad * d * 2 + q_pad * n_pad * 4)

    return pl.pallas_call(
        kernel,
        out_shape=jax.ShapeDtypeStruct((q_pad, n_pad), jnp.int32),
        grid_spec=pltpu.PrefetchScalarGridSpec(
            num_scalar_prefetch=0,
            grid=grid,
            in_specs=[pl.BlockSpec((tq, d), lambda i, j: (i, 0)),
                      pl.BlockSpec((tn, d), lambda i, j: (j, 0))],
            out_specs=pl.BlockSpec((tq, tn), lambda i, j: (i, j))),
        compiler_params=pltpu.CompilerParams(
            dimension_semantics=("parallel", "parallel"),
            vmem_limit_bytes=32 * 1024 * 1024),
        cost_estimate=cost,
    )(test_pm1, train01)


# ---------------------------------------------------------------------------
# Forward (PrecisionRecallF1_Faiss.forward -> (mean_precision, None))
# ---------------------------------------------------------------------------
@functools.partial(jax.jit, static_argnames=("top_r",))
def _mean_precision_at_r(train_f, train_y, test_f, test_y, *, top_r):
    n_train, d = train_f.shape
    q = test_f.shape[0]

    # np.sign(x) == 1  <=>  x > 0 strictly.  bf16 is exact for {0,1}/{-1,+1}.
    # No transpose: both operands keep the bit axis last; the kernel contracts
    # on it directly.
    train01 = (train_f > 0).astype(jnp.bfloat16)                        # (N, D)
    test_pm1 = jnp.where(test_f > 0, -1.0, 1.0).astype(jnp.bfloat16)    # (Q, D)

    if (2 * d + 1) * n_train < 2 ** 31:
        # Primary path: streaming per-row top-r fused in the kernel; only
        # (Q, top_r) int32 keys ever touch HBM.  Ties -> lower train index.
        keys = fused_hamming_topr_keys(test_pm1, train01, top_r)
        top_idx = keys % n_train
    else:
        # TODO(synk): at this num_train the combined int32 key overflows; fall
        # back to the dense int32 proxy matrix + stable argsort.
        proxy = dense_hamming_proxy(test_pm1, train01)
        order = jnp.argsort(proxy, axis=1, stable=True)
        top_idx = order[:q, :top_r]

    knn_labels = train_y[top_idx]                                       # (Q, top_r)
    matches = (knn_labels == test_y[:, None]).astype(jnp.float32)
    precisions = jnp.sum(matches, axis=1) / float(top_r)
    return jnp.mean(precisions)


class PrecisionRecallF1FaissPallas:
    """JAX/Pallas port of PrecisionRecallF1_Faiss.forward -> (mean_precision, None)."""

    def __init__(self, num_retrieved):
        self.num_retrieved = int(num_retrieved)

    def __call__(self, train_f, train_y, test_f, test_y):
        # forward() only returns mean precision; the recall side of
        # cal_mP_top_test is unused and therefore not computed.
        mpre = _mean_precision_at_r(train_f, train_y, test_f, test_y,
                                    top_r=self.num_retrieved)
        return mpre, None


if __name__ == "__main__":
    import numpy as np

    key = jax.random.PRNGKey(0)
    k1, k2, k3, k4 = jax.random.split(key, 4)

    num_train, num_test, num_bits, num_classes = 256, 16, 32, 4
    num_retrieved = 8

    train_f = jax.random.normal(k1, (num_train, num_bits), dtype=jnp.float32)
    test_f = jax.random.normal(k2, (num_test, num_bits), dtype=jnp.float32)
    train_y = jax.random.randint(k3, (num_train,), 0, num_classes, dtype=jnp.int32)
    test_y = jax.random.randint(k4, (num_test,), 0, num_classes, dtype=jnp.int32)

    metric = PrecisionRecallF1FaissPallas(num_retrieved)
    mpre, _ = metric(train_f, train_y, test_f, test_y)
    mpre = jax.block_until_ready(mpre)

    # Pure-numpy reference (true Hamming distance, lower-index-first tie-break).
    tb = (np.asarray(train_f) > 0).astype(np.int64)
    qb = (np.asarray(test_f) > 0).astype(np.int64)
    ref_dist = np.abs(qb[:, None, :] - tb[None, :, :]).sum(-1)
    ref_key = ref_dist * num_train + np.arange(num_train)[None, :]
    ref_idx = np.argsort(ref_key, axis=1)[:, :num_retrieved]
    ref_labels = np.asarray(train_y)[ref_idx]
    ref_prec = ((ref_labels == np.asarray(test_y)[:, None]).sum(1)
                / num_retrieved).mean()
    assert abs(float(mpre) - float(ref_prec)) < 1e-6, (float(mpre), float(ref_prec))

    # Exact retrieved-index check for the fused streaming-top-r kernel.
    train01 = (train_f > 0).astype(jnp.bfloat16)
    test_pm1 = jnp.where(test_f > 0, -1.0, 1.0).astype(jnp.bfloat16)
    fused_keys = jax.block_until_ready(
        fused_hamming_topr_keys(test_pm1, train01, num_retrieved))
    fused_idx = np.asarray(fused_keys) % num_train
    assert np.array_equal(fused_idx, ref_idx), "fused top-r index mismatch"

    # Also exercise the dense fallback kernel (used only at huge num_train).
    proxy = jax.block_until_ready(dense_hamming_proxy(test_pm1, train01))
    dense_idx = np.asarray(
        jnp.argsort(proxy, axis=1, stable=True)[:num_test, :num_retrieved])
    assert np.array_equal(dense_idx, ref_idx), "dense fallback index mismatch"

    print("KERNEL_OK")
</pallas_src>

<mosaic_0001>
module attributes {stable_mosaic.version = 11 : i64} {
  func.func @_fused_topk_kernel(%arg0: i32, %arg1: i32, %arg2: memref<16x32xbf16, #tpu.memory_space<vmem>>, %arg3: memref<256x32xbf16, #tpu.memory_space<vmem>>, %arg4: memref<16x128xi32, #tpu.memory_space<vmem>>, %arg5: memref<16x128xi32, #tpu.memory_space<vmem>>) attributes {dimension_semantics = [#tpu.dimension_semantics<parallel>, #tpu.dimension_semantics<arbitrary>], iteration_bounds = array<i64: 1, 1>, scalar_prefetch = 0 : i64, scratch_operands = 1 : i64, tpu.core_type = #tpu.core_type<tc>, window_params = [{transform_indices = @transform_0, window_bounds = array<i64: 16, 32>}, {transform_indices = @transform_1, window_bounds = array<i64: 256, 32>}, {transform_indices = @transform_2, window_bounds = array<i64: 16, 128>}]} {
    %c0_i32 = arith.constant 0 : i32
    %0 = arith.cmpi eq, %arg1, %c0_i32 : i32
    %1 = arith.extui %0 : i1 to i32
    %c0_i32_0 = arith.constant 0 : i32
    %2 = arith.cmpi ne, %1, %c0_i32_0 : i32
    scf.if %2 {
      %c2147483647_i32_44 = arith.constant 2147483647 : i32
      %163 = vector.broadcast %c2147483647_i32_44 : i32 to vector<16x128xi32>
      %c0_45 = arith.constant 0 : index
      %c0_46 = arith.constant 0 : index
      %164 = vector.load %arg5[%c0_45, %c0_46] : memref<16x128xi32, #tpu.memory_space<vmem>>, vector<16x128xi32>
      tpu.vector_store %arg5[%c0_45, %c0_46], %163 {strides = array<i32>} : memref<16x128xi32, #tpu.memory_space<vmem>>, vector<16x128xi32>,
    } else {
    }
    %c0 = arith.constant 0 : index
    %c0_1 = arith.constant 0 : index
    %3 = vector.load %arg2[%c0, %c0_1] : memref<16x32xbf16, #tpu.memory_space<vmem>>, vector<16x32xbf16>
    %c0_2 = arith.constant 0 : index
    %c0_3 = arith.constant 0 : index
    %4 = vector.load %arg3[%c0_2, %c0_3] : memref<256x32xbf16, #tpu.memory_space<vmem>>, vector<256x32xbf16>
    %cst = arith.constant dense<0.000000e+00> : vector<16x256xf32>
    %5 = tpu.matmul %3, %4, %cst {dimension_numbers = #tpu.dot_dimension_numbers<[1], [1], [0], [0], [0, 0, 1, 0], [], []>} : vector<16x32xbf16>, vector<256x32xbf16>, vector<16x256xf32> -> vector<16x256xf32>
    %6 = arith.fptosi %5 : vector<16x256xf32> to vector<16x256xi32>
    %7 = tpu.iota {dimensions = array<i32: 1>} : vector<16x256xi32>
    %c256_i32 = arith.constant 256 : i32
    %8 = arith.muli %arg1, %c256_i32 : i32
    %9 = vector.broadcast %8 : i32 to vector<16x256xi32>
    %10 = arith.addi %7, %9 : vector<16x256xi32>
    %c32_i32 = arith.constant 32 : i32
    %11 = vector.broadcast %c32_i32 : i32 to vector<16x256xi32>
    %12 = arith.addi %6, %11 : vector<16x256xi32>
    %c256_i32_4 = arith.constant 256 : i32
    %13 = vector.broadcast %c256_i32_4 : i32 to vector<16x256xi32>
    %14 = arith.muli %12, %13 : vector<16x256xi32>
    %15 = arith.addi %14, %10 : vector<16x256xi32>
    %c256_i32_5 = arith.constant 256 : i32
    %16 = vector.broadcast %c256_i32_5 : i32 to vector<16x256xi32>
    %17 = arith.cmpi slt, %10, %16 : vector<16x256xi32>
    %c2147483647_i32 = arith.constant 2147483647 : i32
    %18 = vector.broadcast %c2147483647_i32 : i32 to vector<16x256xi32>
    %19 = arith.select %17, %15, %18 : vector<16x256xi1>, vector<16x256xi32>
    %c0_6 = arith.constant 0 : index
    %c0_7 = arith.constant 0 : index
    %20 = vector.load %arg5[%c0_6, %c0_7] : memref<16x128xi32, #tpu.memory_space<vmem>>, vector<16x128xi32>
    %c2147483647_i32_8 = arith.constant 2147483647 : i32
    %21 = vector.broadcast %c2147483647_i32_8 : i32 to vector<16x128xi32>
    %22 = tpu.iota {dimensions = array<i32: 1>} : vector<16x128xi32>
    %cst_9 = arith.constant dense<2147483647> : vector<16xi32>
    %23 = vector.multi_reduction <minsi>, %20, %cst_9 [1] : vector<16x128xi32> to vector<16xi32>
    %24 = vector.shape_cast %23 : vector<16xi32> to vector<16x1xi32>
    %cst_10 = arith.constant dense<2147483647> : vector<16xi32>
    %25 = vector.multi_reduction <minsi>, %19, %cst_10 [1] : vector<16x256xi32> to vector<16xi32>
    %26 = vector.shape_cast %25 : vector<16xi32> to vector<16x1xi32>
    %27 = arith.minsi %24, %26 : vector<16x1xi32>
    %c0_i32_11 = arith.constant 0 : i32
    %28 = vector.broadcast %c0_i32_11 : i32 to vector<16x128xi32>
    %29 = arith.cmpi eq, %22, %28 : vector<16x128xi32>
    %30 = vector.shape_cast %27 : vector<16x1xi32> to vector<16x1xi32>
    %31 = vector.broadcast %30 : vector<16x1xi32> to vector<16x128xi32>
    %32 = arith.select %29, %31, %21 : vector<16x128xi1>, vector<16x128xi32>
    %33 = vector.broadcast %27 : vector<16x1xi32> to vector<16x128xi32>
    %34 = arith.cmpi eq, %20, %33 : vector<16x128xi32>
    %c2147483647_i32_12 = arith.constant 2147483647 : i32
    %35 = vector.broadcast %c2147483647_i32_12 : i32 to vector<16x128xi32>
    %36 = arith.select %34, %35, %20 : vector<16x128xi1>, vector<16x128xi32>
    %37 = vector.broadcast %27 : vector<16x1xi32> to vector<16x256xi32>
    %38 = arith.cmpi eq, %19, %37 : vector<16x256xi32>
    %c2147483647_i32_13 = arith.constant 2147483647 : i32
    %39 = vector.broadcast %c2147483647_i32_13 : i32 to vector<16x256xi32>
    %40 = arith.select %38, %39, %19 : vector<16x256xi1>, vector<16x256xi32>
    %cst_14 = arith.constant dense<2147483647> : vector<16xi32>
    %41 = vector.multi_reduction <minsi>, %36, %cst_14 [1] : vector<16x128xi32> to vector<16xi32>
    %42 = vector.shape_cast %41 : vector<16xi32> to vector<16x1xi32>
    %cst_15 = arith.constant dense<2147483647> : vector<16xi32>
    %43 = vector.multi_reduction <minsi>, %40, %cst_15 [1] : vector<16x256xi32> to vector<16xi32>
    %44 = vector.shape_cast %43 : vector<16xi32> to vector<16x1xi32>
    %45 = arith.minsi %42, %44 : vector<16x1xi32>
    %c1_i32 = arith.constant 1 : i32
    %46 = vector.broadcast %c1_i32 : i32 to vector<16x128xi32>
    %47 = arith.cmpi eq, %22, %46 : vector<16x128xi32>
    %48 = vector.shape_cast %45 : vector<16x1xi32> to vector<16x1xi32>
    %49 = vector.broadcast %48 : vector<16x1xi32> to vector<16x128xi32>
    %50 = arith.select %47, %49, %32 : vector<16x128xi1>, vector<16x128xi32>
    %51 = vector.broadcast %45 : vector<16x1xi32> to vector<16x128xi32>
    %52 = arith.cmpi eq, %36, %51 : vector<16x128xi32>
    %c2147483647_i32_16 = arith.constant 2147483647 : i32
    %53 = vector.broadcast %c2147483647_i32_16 : i32 to vector<16x128xi32>
    %54 = arith.select %52, %53, %36 : vector<16x128xi1>, vector<16x128xi32>
    %55 = vector.broadcast %45 : vector<16x1xi32> to vector<16x256xi32>
    %56 = arith.cmpi eq, %40, %55 : vector<16x256xi32>
    %c2147483647_i32_17 = arith.constant 2147483647 : i32
    %57 = vector.broadcast %c2147483647_i32_17 : i32 to vector<16x256xi32>
    %58 = arith.select %56, %57, %40 : vector<16x256xi1>, vector<16x256xi32>
    %cst_18 = arith.constant dense<2147483647> : vector<16xi32>
    %59 = vector.multi_reduction <minsi>, %54, %cst_18 [1] : vector<16x128xi32> to vector<16xi32>
    %60 = vector.shape_cast %59 : vector<16xi32> to vector<16x1xi32>
    %cst_19 = arith.constant dense<2147483647> : vector<16xi32>
    %61 = vector.multi_reduction <minsi>, %58, %cst_19 [1] : vector<16x256xi32> to vector<16xi32>
    %62 = vector.shape_cast %61 : vector<16xi32> to vector<16x1xi32>
    %63 = arith.minsi %60, %62 : vector<16x1xi32>
    %c2_i32 = arith.constant 2 : i32
    %64 = vector.broadcast %c2_i32 : i32 to vector<16x128xi32>
    %65 = arith.cmpi eq, %22, %64 : vector<16x128xi32>
    %66 = vector.shape_cast %63 : vector<16x1xi32> to vector<16x1xi32>
    %67 = vector.broadcast %66 : vector<16x1xi32> to vector<16x128xi32>
    %68 = arith.select %65, %67, %50 : vector<16x128xi1>, vector<16x128xi32>
    %69 = vector.broadcast %63 : vector<16x1xi32> to vector<16x128xi32>
    %70 = arith.cmpi eq, %54, %69 : vector<16x128xi32>
    %c2147483647_i32_20 = arith.constant 2147483647 : i32
    %71 = vector.broadcast %c2147483647_i32_20 : i32 to vector<16x128xi32>
    %72 = arith.select %70, %71, %54 : vector<16x128xi1>, vector<16x128xi32>
    %73 = vector.broadcast %63 : vector<16x1xi32> to vector<16x256xi32>
    %74 = arith.cmpi eq, %58, %73 : vector<16x256xi32>
    %c2147483647_i32_21 = arith.constant 2147483647 : i32
    %75 = vector.broadcast %c2147483647_i32_21 : i32 to vector<16x256xi32>
    %76 = arith.select %74, %75, %58 : vector<16x256xi1>, vector<16x256xi32>
    %cst_22 = arith.constant dense<2147483647> : vector<16xi32>
    %77 = vector.multi_reduction <minsi>, %72, %cst_22 [1] : vector<16x128xi32> to vector<16xi32>
    %78 = vector.shape_cast %77 : vector<16xi32> to vector<16x1xi32>
    %cst_23 = arith.constant dense<2147483647> : vector<16xi32>
    %79 = vector.multi_reduction <minsi>, %76, %cst_23 [1] : vector<16x256xi32> to vector<16xi32>
    %80 = vector.shape_cast %79 : vector<16xi32> to vector<16x1xi32>
    %81 = arith.minsi %78, %80 : vector<16x1xi32>
    %c3_i32 = arith.constant 3 : i32
    %82 = vector.broadcast %c3_i32 : i32 to vector<16x128xi32>
    %83 = arith.cmpi eq, %22, %82 : vector<16x128xi32>
    %84 = vector.shape_cast %81 : vector<16x1xi32> to vector<16x1xi32>
    %85 = vector.broadcast %84 : vector<16x1xi32> to vector<16x128xi32>
    %86 = arith.select %83, %85, %68 : vector<16x128xi1>, vector<16x128xi32>
    %87 = vector.broadcast %81 : vector<16x1xi32> to vector<16x128xi32>
    %88 = arith.cmpi eq, %72, %87 : vector<16x128xi32>
    %c2147483647_i32_24 = arith.constant 2147483647 : i32
    %89 = vector.broadcast %c2147483647_i32_24 : i32 to vector<16x128xi32>
    %90 = arith.select %88, %89, %72 : vector<16x128xi1>, vector<16x128xi32>
    %91 = vector.broadcast %81 : vector<16x1xi32> to vector<16x256xi32>
    %92 = arith.cmpi eq, %76, %91 : vector<16x256xi32>
    %c2147483647_i32_25 = arith.constant 2147483647 : i32
    %93 = vector.broadcast %c2147483647_i32_25 : i32 to vector<16x256xi32>
    %94 = arith.select %92, %93, %76 : vector<16x256xi1>, vector<16x256xi32>
    %cst_26 = arith.constant dense<2147483647> : vector<16xi32>
    %95 = vector.multi_reduction <minsi>, %90, %cst_26 [1] : vector<16x128xi32> to vector<16xi32>
    %96 = vector.shape_cast %95 : vector<16xi32> to vector<16x1xi32>
    %cst_27 = arith.constant dense<2147483647> : vector<16xi32>
    %97 = vector.multi_reduction <minsi>, %94, %cst_27 [1] : vector<16x256xi32> to vector<16xi32>
    %98 = vector.shape_cast %97 : vector<16xi32> to vector<16x1xi32>
    %99 = arith.minsi %96, %98 : vector<16x1xi32>
    %c4_i32 = arith.constant 4 : i32
    %100 = vector.broadcast %c4_i32 : i32 to vector<16x128xi32>
    %101 = arith.cmpi eq, %22, %100 : vector<16x128xi32>
    %102 = vector.shape_cast %99 : vector<16x1xi32> to vector<16x1xi32>
    %103 = vector.broadcast %102 : vector<16x1xi32> to vector<16x128xi32>
    %104 = arith.select %101, %103, %86 : vector<16x128xi1>, vector<16x128xi32>
    %105 = vector.broadcast %99 : vector<16x1xi32> to vector<16x128xi32>
    %106 = arith.cmpi eq, %90, %105 : vector<16x128xi32>
    %c2147483647_i32_28 = arith.constant 2147483647 : i32
    %107 = vector.broadcast %c2147483647_i32_28 : i32 to vector<16x128xi32>
    %108 = arith.select %106, %107, %90 : vector<16x128xi1>, vector<16x128xi32>
    %109 = vector.broadcast %99 : vector<16x1xi32> to vector<16x256xi32>
    %110 = arith.cmpi eq, %94, %109 : vector<16x256xi32>
    %c2147483647_i32_29 = arith.constant 2147483647 : i32
    %111 = vector.broadcast %c2147483647_i32_29 : i32 to vector<16x256xi32>
    %112 = arith.select %110, %111, %94 : vector<16x256xi1>, vector<16x256xi32>
    %cst_30 = arith.constant dense<2147483647> : vector<16xi32>
    %113 = vector.multi_reduction <minsi>, %108, %cst_30 [1] : vector<16x128xi32> to vector<16xi32>
    %114 = vector.shape_cast %113 : vector<16xi32> to vector<16x1xi32>
    %cst_31 = arith.constant dense<2147483647> : vector<16xi32>
    %115 = vector.multi_reduction <minsi>, %112, %cst_31 [1] : vector<16x256xi32> to vector<16xi32>
    %116 = vector.shape_cast %115 : vector<16xi32> to vector<16x1xi32>
    %117 = arith.minsi %114, %116 : vector<16x1xi32>
    %c5_i32 = arith.constant 5 : i32
    %118 = vector.broadcast %c5_i32 : i32 to vector<16x128xi32>
    %119 = arith.cmpi eq, %22, %118 : vector<16x128xi32>
    %120 = vector.shape_cast %117 : vector<16x1xi32> to vector<16x1xi32>
    %121 = vector.broadcast %120 : vector<16x1xi32> to vector<16x128xi32>
    %122 = arith.select %119, %121, %104 : vector<16x128xi1>, vector<16x128xi32>
    %123 = vector.broadcast %117 : vector<16x1xi32> to vector<16x128xi32>
    %124 = arith.cmpi eq, %108, %123 : vector<16x128xi32>
    %c2147483647_i32_32 = arith.constant 2147483647 : i32
    %125 = vector.broadcast %c2147483647_i32_32 : i32 to vector<16x128xi32>
    %126 = arith.select %124, %125, %108 : vector<16x128xi1>, vector<16x128xi32>
    %127 = vector.broadcast %117 : vector<16x1xi32> to vector<16x256xi32>
    %128 = arith.cmpi eq, %112, %127 : vector<16x256xi32>
    %c2147483647_i32_33 = arith.constant 2147483647 : i32
    %129 = vector.broadcast %c2147483647_i32_33 : i32 to vector<16x256xi32>
    %130 = arith.select %128, %129, %112 : vector<16x256xi1>, vector<16x256xi32>
    %cst_34 = arith.constant dense<2147483647> : vector<16xi32>
    %131 = vector.multi_reduction <minsi>, %126, %cst_34 [1] : vector<16x128xi32> to vector<16xi32>
    %132 = vector.shape_cast %131 : vector<16xi32> to vector<16x1xi32>
    %cst_35 = arith.constant dense<2147483647> : vector<16xi32>
    %133 = vector.multi_reduction <minsi>, %130, %cst_35 [1] : vector<16x256xi32> to vector<16xi32>
    %134 = vector.shape_cast %133 : vector<16xi32> to vector<16x1xi32>
    %135 = arith.minsi %132, %134 : vector<16x1xi32>
    %c6_i32 = arith.constant 6 : i32
    %136 = vector.broadcast %c6_i32 : i32 to vector<16x128xi32>
    %137 = arith.cmpi eq, %22, %136 : vector<16x128xi32>
    %138 = vector.shape_cast %135 : vector<16x1xi32> to vector<16x1xi32>
    %139 = vector.broadcast %138 : vector<16x1xi32> to vector<16x128xi32>
    %140 = arith.select %137, %139, %122 : vector<16x128xi1>, vector<16x128xi32>
    %141 = vector.broadcast %135 : vector<16x1xi32> to vector<16x128xi32>
    %142 = arith.cmpi eq, %126, %141 : vector<16x128xi32>
    %c2147483647_i32_36 = arith.constant 2147483647 : i32
    %143 = vector.broadcast %c2147483647_i32_36 : i32 to vector<16x128xi32>
    %144 = arith.select %142, %143, %126 : vector<16x128xi1>, vector<16x128xi32>
    %145 = vector.broadcast %135 : vector<16x1xi32> to vector<16x256xi32>
    %146 = arith.cmpi eq, %130, %145 : vector<16x256xi32>
    %c2147483647_i32_37 = arith.constant 2147483647 : i32
    %147 = vector.broadcast %c2147483647_i32_37 : i32 to vector<16x256xi32>
    %148 = arith.select %146, %147, %130 : vector<16x256xi1>, vector<16x256xi32>
    %cst_38 = arith.constant dense<2147483647> : vector<16xi32>
    %149 = vector.multi_reduction <minsi>, %144, %cst_38 [1] : vector<16x128xi32> to vector<16xi32>
    %150 = vector.shape_cast %149 : vector<16xi32> to vector<16x1xi32>
    %cst_39 = arith.constant dense<2147483647> : vector<16xi32>
    %151 = vector.multi_reduction <minsi>, %148, %cst_39 [1] : vector<16x256xi32> to vector<16xi32>
    %152 = vector.shape_cast %151 : vector<16xi32> to vector<16x1xi32>
    %153 = arith.minsi %150, %152 : vector<16x1xi32>
    %c7_i32 = arith.constant 7 : i32
    %154 = vector.broadcast %c7_i32 : i32 to vector<16x128xi32>
    %155 = arith.cmpi eq, %22, %154 : vector<16x128xi32>
    %156 = vector.shape_cast %153 : vector<16x1xi32> to vector<16x1xi32>
    %157 = vector.broadcast %156 : vector<16x1xi32> to vector<16x128xi32>
    %158 = arith.select %155, %157, %140 : vector<16x128xi1>, vector<16x128xi32>
    %c0_40 = arith.constant 0 : index
    %c0_41 = arith.constant 0 : index
    %159 = vector.load %arg5[%c0_40, %c0_41] : memref<16x128xi32, #tpu.memory_space<vmem>>, vector<16x128xi32>
    tpu.vector_store %arg5[%c0_40, %c0_41], %158 {strides = array<i32>} : memref<16x128xi32, #tpu.memory_space<vmem>>, vector<16x128xi32>,
    %c0_i32_42 = arith.constant 0 : i32
    %160 = arith.cmpi eq, %arg1, %c0_i32_42 : i32
    %161 = arith.extui %160 : i1 to i32
    %c0_i32_43 = arith.constant 0 : i32
    %162 = arith.cmpi ne, %161, %c0_i32_43 : i32
    scf.if %162 {
      %c0_44 = arith.constant 0 : index
      %c0_45 = arith.constant 0 : index
      %163 = vector.load %arg4[%c0_44, %c0_45] : memref<16x128xi32, #tpu.memory_space<vmem>>, vector<16x128xi32>
      tpu.vector_store %arg4[%c0_44, %c0_45], %158 {strides = array<i32>} : memref<16x128xi32, #tpu.memory_space<vmem>>, vector<16x128xi32>,
    } else {
    }
    return
  }
  func.func @transform_0(%arg0: i32, %arg1: i32) -> (i32, i32) {
    %c0_i32 = arith.constant 0 : i32
    %c0_i32_0 = arith.constant 0 : i32
    return %arg0, %c0_i32 : i32, i32
  }
  func.func @transform_1(%arg0: i32, %arg1: i32) -> (i32, i32) {
    %c0_i32 = arith.constant 0 : i32
    %c0_i32_0 = arith.constant 0 : i32
    return %arg1, %c0_i32 : i32, i32
  }
  func.func @transform_2(%arg0: i32, %arg1: i32) -> (i32, i32) {
    %c0_i32 = arith.constant 0 : i32
    %c0_i32_0 = arith.constant 0 : i32
    return %arg0, %c0_i32 : i32, i32
  }
}

</mosaic_0001>

<llo_original>
// kernel: _mean_precision_at_r.1
$region0: #{_mean_precision_at_r.1}
  #allocation0 [shape = 'u32[]', space=smem, size = 0x4, offset = 0x4, fixed_abs, tag = 'smem constant byte address 0x4 - core index']
  #allocation1 [shape = 'u32[144,128]{1,0:T(1,128)}', space=vmem, size = 0x12000, scoped, tag = 'internal scratch']
  #allocation2 [shape = 's32[16,128]{1,0:T(8,128)}', space=vmem, size = 0x2000, scoped, tag = 'scratch operand']
  %s0 = inlined_call_operand.vmem [shape: bf16[16,32], index: 0, kind: input, shape index: {}]
  %s1 = inlined_call_operand.vmem [shape: bf16[256,32], index: 1, kind: input, shape index: {}]
  %s2 = inlined_call_operand.vmem [shape: s32[16,128], index: 2, kind: output, shape index: {}]
  %s3 = sld [smem:[#allocation0]]
  $region26: #{_mean_precision_at_r.1} parent=0
    _
  %s5 = ssub.s32 1, %s3
  %s6 = scalar_select 0, %s5, %s3
  // Predicated region
  $region2: #{_mean_precision_at_r.1} parent=0 // pred_check
    _
  $region3: #{_mean_precision_at_r.1} parent=0 // pred_check_branch
    %8 = sbr.rel (0) target = $region5
  $region4: #{_mean_precision_at_r.1} parent=0 // pred_region
    _
  $region5: #{_mean_precision_at_r.1} parent=0 // pred_fallthru
    _
  // Predicated region
  $region6: #{_mean_precision_at_r.1} parent=0 // pred_check
    _
  $region7: #{_mean_precision_at_r.1} parent=0 // pred_check_branch
    %10 = sbr.rel (0) target = $region9
  $region8: #{_mean_precision_at_r.1} parent=0 // pred_region
    _
  $region9: #{_mean_precision_at_r.1} parent=0 // pred_fallthru
    _
  %p12 = scmp.eq.s32.totalorder 0, 0
  // Predicated region
  $region10: #{_mean_precision_at_r.1} parent=0 // pred_check
    %p13 = pneg %p12
  $region11: #{_mean_precision_at_r.1} parent=0 // pred_check_branch
    %15 = sbr.rel (%p13) target = $region13
  $region12: #{_mean_precision_at_r.1} parent=0 // pred_region
    %16 = vst [vmem:[#allocation2] sm:$0xff] 2147483647
    %17 = vst [vmem:[#allocation2 + $0x8] sm:$0xff] 2147483647
  $region13: #{_mean_precision_at_r.1} parent=0 // pred_fallthru
    _
  %v18 = vld [vmem:[%s0] sm:$0xf]
  %v19 = vld [vmem:[%s0 + $0x4] sm:$0xf]
  %v20 = vld [vmem:[%s1] sm:$0xf]
  %v21 = vld [vmem:[%s1 + $0x4] sm:$0xf]
  %v22 = vld [vmem:[%s1 + $0x8] sm:$0xf]
  %v23 = vld [vmem:[%s1 + $0xc] sm:$0xf]
  %v24 = vld [vmem:[%s1 + $0x10] sm:$0xf]
  %v25 = vld [vmem:[%s1 + $0x14] sm:$0xf]
  %v26 = vld [vmem:[%s1 + $0x18] sm:$0xf]
  %v27 = vld [vmem:[%s1 + $0x1c] sm:$0xf]
  %v28 = vld [vmem:[%s1 + $0x20] sm:$0xf]
  %v29 = vld [vmem:[%s1 + $0x24] sm:$0xf]
  %v30 = vld [vmem:[%s1 + $0x28] sm:$0xf]
  %v31 = vld [vmem:[%s1 + $0x2c] sm:$0xf]
  %v32 = vld [vmem:[%s1 + $0x30] sm:$0xf]
  %v33 = vld [vmem:[%s1 + $0x34] sm:$0xf]
  %v34 = vld [vmem:[%s1 + $0x38] sm:$0xf]
  %v35 = vld [vmem:[%s1 + $0x3c] sm:$0xf]
  %v36 = vld [vmem:[%s1 + $0x40] sm:$0xf]
  %v37 = vld [vmem:[%s1 + $0x44] sm:$0xf]
  %v38 = vld [vmem:[%s1 + $0x48] sm:$0xf]
  %v39 = vld [vmem:[%s1 + $0x4c] sm:$0xf]
  %v40 = vld [vmem:[%s1 + $0x50] sm:$0xf]
  %v41 = vld [vmem:[%s1 + $0x54] sm:$0xf]
  %v42 = vld [vmem:[%s1 + $0x58] sm:$0xf]
  %v43 = vld [vmem:[%s1 + $0x5c] sm:$0xf]
  %v44 = vld [vmem:[%s1 + $0x60] sm:$0xf]
  %v45 = vld [vmem:[%s1 + $0x64] sm:$0xf]
  %v46 = vld [vmem:[%s1 + $0x68] sm:$0xf]
  %v47 = vld [vmem:[%s1 + $0x6c] sm:$0xf]
  %v48 = vld [vmem:[%s1 + $0x70] sm:$0xf]
  %v49 = vld [vmem:[%s1 + $0x74] sm:$0xf]
  %v50 = vld [vmem:[%s1 + $0x78] sm:$0xf]
  %v51 = vld [vmem:[%s1 + $0x7c] sm:$0xf]
  %v54 = vunpack.c.l.b16 %v18
  %v55 = vunpack.c.l.b16 %v19
  %v56 = vpack.c.b16 %v55, %v54
  %v89 = vunpack.c.l.b16 %v20
  %v90 = vunpack.c.l.b16 %v21
  %v91 = vunpack.c.l.b16 %v22
  %v92 = vunpack.c.l.b16 %v23
  %v93 = vunpack.c.l.b16 %v24
  %v94 = vunpack.c.l.b16 %v25
  %v95 = vunpack.c.l.b16 %v26
  %v96 = vunpack.c.l.b16 %v27
  %v97 = vunpack.c.l.b16 %v28
  %v98 = vunpack.c.l.b16 %v29
  %v99 = vunpack.c.l.b16 %v30
  %v100 = vunpack.c.l.b16 %v31
  %v101 = vunpack.c.l.b16 %v32
  %v102 = vunpack.c.l.b16 %v33
  %v103 = vunpack.c.l.b16 %v34
  %v104 = vunpack.c.l.b16 %v35
  %v105 = vunpack.c.l.b16 %v36
  %v106 = vunpack.c.l.b16 %v37
  %v107 = vunpack.c.l.b16 %v38
  %v108 = vunpack.c.l.b16 %v39
  %v109 = vunpack.c.l.b16 %v40
  %v110 = vunpack.c.l.b16 %v41
  %v111 = vunpack.c.l.b16 %v42
  %v112 = vunpack.c.l.b16 %v43
  %v113 = vunpack.c.l.b16 %v44
  %v114 = vunpack.c.l.b16 %v45
  %v115 = vunpack.c.l.b16 %v46
  %v116 = vunpack.c.l.b16 %v47
  %v117 = vunpack.c.l.b16 %v48
  %v118 = vunpack.c.l.b16 %v49
  %v119 = vunpack.c.l.b16 %v50
  %v120 = vunpack.c.l.b16 %v51
  %v121 = vpack.c.b16 %v90, %v89
  %v122 = vpack.c.b16 %v92, %v91
  %v123 = vpack.c.b16 %v94, %v93
  %v124 = vpack.c.b16 %v96, %v95
  %v125 = vpack.c.b16 %v98, %v97
  %v126 = vpack.c.b16 %v100, %v99
  %v127 = vpack.c.b16 %v102, %v101
  %v128 = vpack.c.b16 %v104, %v103
  %v129 = vpack.c.b16 %v106, %v105
  %v130 = vpack.c.b16 %v108, %v107
  %v131 = vpack.c.b16 %v110, %v109
  %v132 = vpack.c.b16 %v112, %v111
  %v133 = vpack.c.b16 %v114, %v113
  %v134 = vpack.c.b16 %v116, %v115
  %v135 = vpack.c.b16 %v118, %v117
  %v136 = vpack.c.b16 %v120, %v119
  %vm137 = vcmask 261120
  %v139 = vsel %vm137, %v56, 0
  %v142 = vsel %vm137, %v121, 0
  %v145 = vsel %vm137, %v122, 0
  %v148 = vsel %vm137, %v123, 0
  %v151 = vsel %vm137, %v124, 0
  %v154 = vsel %vm137, %v125, 0
  %v157 = vsel %vm137, %v126, 0
  %v160 = vsel %vm137, %v127, 0
  %v163 = vsel %vm137, %v128, 0
  %v166 = vsel %vm137, %v129, 0
  %v169 = vsel %vm137, %v130, 0
  %v172 = vsel %vm137, %v131, 0
  %v175 = vsel %vm137, %v132, 0
  %v178 = vsel %vm137, %v133, 0
  %v181 = vsel %vm137, %v134, 0
  %v184 = vsel %vm137, %v135, 0
  %v187 = vsel %vm137, %v136, 0
  %189 = vmatprep.subr.bf16.mxu0 0
  %190 = vmatpush1.bf16.xpose.msra.mxu0 %v142
  %191 = vmatprep.subr.bf16.mxu0 0
  %192 = vmatpush1.bf16.xpose.msra.mxu0 %v145
  %193 = vmatprep.subr.bf16.mxu0 0
  %194 = vmatpush1.bf16.xpose.msra.mxu0 %v148
  %195 = vmatprep.subr.bf16.mxu0 0
  %196 = vmatpush1.bf16.xpose.msra.mxu0 %v151
  %197 = vmatprep.subr.bf16.mxu0 0
  %198 = vmatpush1.bf16.xpose.msra.mxu0 %v154
  %199 = vmatprep.subr.bf16.mxu0 0
  %200 = vmatpush1.bf16.xpose.msra.mxu0 %v157
  %201 = vmatprep.subr.bf16.mxu0 0
  %202 = vmatpush1.bf16.xpose.msra.mxu0 %v160
  %203 = vmatprep.subr.bf16.mxu0 0
  %204 = vmatpush1.bf16.xpose.msra.mxu0 %v163
  %205 = vmatprep.subr.bf16.mxu0 0
  %206 = vmatpush1.bf16.xpose.msra.mxu0 %v166
  %207 = vmatprep.subr.bf16.mxu0 0
  %208 = vmatpush1.bf16.xpose.msra.mxu0 %v169
  %209 = vmatprep.subr.bf16.mxu0 0
  %210 = vmatpush1.bf16.xpose.msra.mxu0 %v172
  %211 = vmatprep.subr.bf16.mxu0 0
  %212 = vmatpush1.bf16.xpose.msra.mxu0 %v175
  %213 = vmatprep.subr.bf16.mxu0 0
  %214 = vmatpush1.bf16.xpose.msra.mxu0 %v178
  %215 = vmatprep.subr.bf16.mxu0 0
  %216 = vmatpush1.bf16.xpose.msra.mxu0 %v181
  %217 = vmatprep.subr.bf16.mxu0 0
  %218 = vmatpush1.bf16.xpose.msra.mxu0 %v184
  %219 = vmatprep.subr.bf16.mxu0 0
  %220 = vmatpush1.bf16.xpose.msra.mxu0 %v187
  %221 = vmatprep.mubr.bf16.mxu0 0
  %222 = vmatmul.mubr.bf16.gmra.mrb[0].mxu0 %v139
  %v223 = vpop.f32.mrb[0].mxu0
  %v224 = vadd.f32 0.0, %v223
  %v225 = vpop.f32.mrb[0].mxu0
  %v226 = vadd.f32 0.0, %v225
  %v227 = vpop.f32.mrb[0].mxu0
  %v228 = vadd.f32 0.0, %v227
  %v229 = vpop.f32.mrb[0].mxu0
  %v230 = vadd.f32 0.0, %v229
  %231 = vdwg.mxu0
  %v232 = vcvt.f32.s32.to.zero.pseudo %v224
  %v233 = vcvt.f32.s32.to.zero.pseudo %v226
  %v234 = vcvt.f32.s32.to.zero.pseudo %v228
  %v235 = vcvt.f32.s32.to.zero.pseudo %v230
  %v236 = vlaneseq
  %v237 = vand.u32 %v236, 127
  %v238 = vadd.s32 %v237, 128
  %s239 = smul.u32 0, 256
  %v240 = vstv %s239
  %v241 = vadd.s32 %v237, %v240
  %v242 = vadd.s32 %v238, %v240
  %v243 = vadd.s32 %v232, 32
  %v244 = vadd.s32 %v233, 32
  %v245 = vadd.s32 %v234, 32
  %v246 = vadd.s32 %v235, 32
  %v247 = vmul.u32 %v243, 256
  %v248 = vmul.u32 %v244, 256
  %v249 = vmul.u32 %v245, 256
  %v250 = vmul.u32 %v246, 256
  %v251 = vadd.s32 %v247, %v241
  %v252 = vadd.s32 %v248, %v242
  %v253 = vadd.s32 %v249, %v241
  %v254 = vadd.s32 %v250, %v242
  %vm255 = vcmp.lt.s32.totalorder %v241, 256
  %vm256 = vcmp.lt.s32.totalorder %v242, 256
  %v257 = vsel %vm255, %v251, 2147483647
  %v258 = vsel %vm256, %v252, 2147483647
  %v259 = vsel %vm255, %v253, 2147483647
  %v260 = vsel %vm256, %v254, 2147483647
  %v261 = vld [vmem:[#allocation2] sm:$0xff]
  %v262 = vld [vmem:[#allocation2 + $0x8] sm:$0xff]
  %v263 = vand.u32 %v261, 65535
  %v264 = vshra.s32 %v261, 16
  %v265 = vcvt.s32.f32 %v263
  %v266 = vcvt.s32.f32 %v264
  %267 = vmin.xlane.f32.xlu0 %v266
  %v268 = vpop.xlane.xlu0 %267
  %vm269 = vcmp.eq.f32.partialorder %v266, %v268
  %v270 = vsel %vm269, %v265, inf
  %271 = vmin.xlane.f32.xlu0 %v270
  %v272 = vpop.xlane.xlu0 %271
  %v273 = vcvt.f32.s32 %v272
  %v274 = vcvt.f32.s32 %v268
  %v275 = vshll.u32 %v274, 16
  %v276 = vadd.s32 %v275, %v273
  %v277 = vand.u32 %v262, 65535
  %v278 = vshra.s32 %v262, 16
  %v279 = vcvt.s32.f32 %v277
  %v280 = vcvt.s32.f32 %v278
  %281 = vmin.xlane.f32.xlu0 %v280
  %v282 = vpop.xlane.xlu0 %281
  %vm283 = vcmp.eq.f32.partialorder %v280, %v282
  %v284 = vsel %vm283, %v279, inf
  %285 = vmin.xlane.f32.xlu0 %v284
  %v286 = vpop.xlane.xlu0 %285
  %v287 = vcvt.f32.s32 %v286
  %v288 = vcvt.f32.s32 %v282
  %v289 = vshll.u32 %v288, 16
  %v290 = vadd.s32 %v289, %v287
  %vm291 = vcmp.lt.s32.totalorder %v257, %v258
  %v292 = vsel %vm291, %v257, %v258
  %v293 = vand.u32 %v292, 65535
  %v294 = vshra.s32 %v292, 16
  %v295 = vcvt.s32.f32 %v293
  %v296 = vcvt.s32.f32 %v294
  %297 = vmin.xlane.f32.xlu0 %v296
  %v298 = vpop.xlane.xlu0 %297
  %vm299 = vcmp.eq.f32.partialorder %v296, %v298
  %v300 = vsel %vm299, %v295, inf
  %301 = vmin.xlane.f32.xlu0 %v300
  %v302 = vpop.xlane.xlu0 %301
  %v303 = vcvt.f32.s32 %v302
  %v304 = vcvt.f32.s32 %v298
  %v305 = vshll.u32 %v304, 16
  %v306 = vadd.s32 %v305, %v303
  %vm307 = vcmp.lt.s32.totalorder %v259, %v260
  %v308 = vsel %vm307, %v259, %v260
  %v309 = vand.u32 %v308, 65535
  %v310 = vshra.s32 %v308, 16
  %v311 = vcvt.s32.f32 %v309
  %v312 = vcvt.s32.f32 %v310
  %313 = vmin.xlane.f32.xlu0 %v312
  %v314 = vpop.xlane.xlu0 %313
  %vm315 = vcmp.eq.f32.partialorder %v312, %v314
  %v316 = vsel %vm315, %v311, inf
  %317 = vmin.xlane.f32.xlu0 %v316
  %v318 = vpop.xlane.xlu0 %317
  %v319 = vcvt.f32.s32 %v318
  %v320 = vcvt.f32.s32 %v314
  %v321 = vshll.u32 %v320, 16
  %v322 = vadd.s32 %v321, %v319
  %vm323 = vcmp.lt.s32.totalorder %v276, %v306
  %v324 = vsel %vm323, %v276, %v306
  %vm325 = vcmp.lt.s32.totalorder %v290, %v322
  %v326 = vsel %vm325, %v290, %v322
  %vm327 = vcmp.eq.s32.totalorder %v237, 0
  %v328 = vsel %vm327, %v324, 2147483647
  %v329 = vsel %vm327, %v326, 2147483647
  %vm330 = vcmp.eq.s32.totalorder %v261, %v324
  %vm331 = vcmp.eq.s32.totalorder %v262, %v326
  %v332 = vsel %vm330, 2147483647, %v261
  %v333 = vsel %vm331, 2147483647, %v262
  %vm334 = vcmp.eq.s32.totalorder %v257, %v324
  %vm335 = vcmp.eq.s32.totalorder %v258, %v324
  %vm336 = vcmp.eq.s32.totalorder %v259, %v326
  %vm337 = vcmp.eq.s32.totalorder %v260, %v326
  %v338 = vsel %vm334, 2147483647, %v257
  %v339 = vsel %vm335, 2147483647, %v258
  %v340 = vsel %vm336, 2147483647, %v259
  %v341 = vsel %vm337, 2147483647, %v260
  %v342 = vand.u32 %v332, 65535
  %v343 = vshra.s32 %v332, 16
  %v344 = vcvt.s32.f32 %v342
  %v345 = vcvt.s32.f32 %v343
  %346 = vmin.xlane.f32.xlu0 %v345
  %v347 = vpop.xlane.xlu0 %346
  %vm348 = vcmp.eq.f32.partialorder %v345, %v347
  %v349 = vsel %vm348, %v344, inf
  %350 = vmin.xlane.f32.xlu0 %v349
  %v351 = vpop.xlane.xlu0 %350
  %v352 = vcvt.f32.s32 %v351
  %v353 = vcvt.f32.s32 %v347
  %v354 = vshll.u32 %v353, 16
  %v355 = vadd.s32 %v354, %v352
  %v356 = vand.u32 %v333, 65535
  %v357 = vshra.s32 %v333, 16
  %v358 = vcvt.s32.f32 %v356
  %v359 = vcvt.s32.f32 %v357
  %360 = vmin.xlane.f32.xlu0 %v359
  %v361 = vpop.xlane.xlu0 %360
  %vm362 = vcmp.eq.f32.partialorder %v359, %v361
  %v363 = vsel %vm362, %v358, inf
  %364 = vmin.xlane.f32.xlu0 %v363
  %v365 = vpop.xlane.xlu0 %364
  %v366 = vcvt.f32.s32 %v365
  %v367 = vcvt.f32.s32 %v361
  %v368 = vshll.u32 %v367, 16
  %v369 = vadd.s32 %v368, %v366
  %vm370 = vcmp.lt.s32.totalorder %v338, %v339
  %v371 = vsel %vm370, %v338, %v339
  %v372 = vand.u32 %v371, 65535
  %v373 = vshra.s32 %v371, 16
  %v374 = vcvt.s32.f32 %v372
  %v375 = vcvt.s32.f32 %v373
  %376 = vmin.xlane.f32.xlu0 %v375
  %v377 = vpop.xlane.xlu0 %376
  %vm378 = vcmp.eq.f32.partialorder %v375, %v377
  %v379 = vsel %vm378, %v374, inf
  %380 = vmin.xlane.f32.xlu0 %v379
  %v381 = vpop.xlane.xlu0 %380
  %v382 = vcvt.f32.s32 %v381
  %v383 = vcvt.f32.s32 %v377
  %v384 = vshll.u32 %v383, 16
  %v385 = vadd.s32 %v384, %v382
  %vm386 = vcmp.lt.s32.totalorder %v340, %v341
  %v387 = vsel %vm386, %v340, %v341
  %v388 = vand.u32 %v387, 65535
  %v389 = vshra.s32 %v387, 16
  %v390 = vcvt.s32.f32 %v388
  %v391 = vcvt.s32.f32 %v389
  %392 = vmin.xlane.f32.xlu0 %v391
  %v393 = vpop.xlane.xlu0 %392
  %vm394 = vcmp.eq.f32.partialorder %v391, %v393
  %v395 = vsel %vm394, %v390, inf
  %396 = vmin.xlane.f32.xlu0 %v395
  %v397 = vpop.xlane.xlu0 %396
  %v398 = vcvt.f32.s32 %v397
  %v399 = vcvt.f32.s32 %v393
  %v400 = vshll.u32 %v399, 16
  %v401 = vadd.s32 %v400, %v398
  %vm402 = vcmp.lt.s32.totalorder %v355, %v385
  %v403 = vsel %vm402, %v355, %v385
  %vm404 = vcmp.lt.s32.totalorder %v369, %v401
  %v405 = vsel %vm404, %v369, %v401
  %vm406 = vcmp.eq.s32.totalorder %v237, 1
  %v407 = vsel %vm406, %v403, %v328
  %v408 = vsel %vm406, %v405, %v329
  %vm409 = vcmp.eq.s32.totalorder %v332, %v403
  %vm410 = vcmp.eq.s32.totalorder %v333, %v405
  %v411 = vsel %vm409, 2147483647, %v332
  %v412 = vsel %vm410, 2147483647, %v333
  %vm413 = vcmp.eq.s32.totalorder %v338, %v403
  %vm414 = vcmp.eq.s32.totalorder %v339, %v403
  %vm415 = vcmp.eq.s32.totalorder %v340, %v405
  %vm416 = vcmp.eq.s32.totalorder %v341, %v405
  %v417 = vsel %vm413, 2147483647, %v338
  %v418 = vsel %vm414, 2147483647, %v339
  %v419 = vsel %vm415, 2147483647, %v340
  %v420 = vsel %vm416, 2147483647, %v341
  %v421 = vand.u32 %v411, 65535
  %v422 = vshra.s32 %v411, 16
  %v423 = vcvt.s32.f32 %v421
  %v424 = vcvt.s32.f32 %v422
  %425 = vmin.xlane.f32.xlu0 %v424
  %v426 = vpop.xlane.xlu0 %425
  %vm427 = vcmp.eq.f32.partialorder %v424, %v426
  %v428 = vsel %vm427, %v423, inf
  %429 = vmin.xlane.f32.xlu0 %v428
  %v430 = vpop.xlane.xlu0 %429
  %v431 = vcvt.f32.s32 %v430
  %v432 = vcvt.f32.s32 %v426
  %v433 = vshll.u32 %v432, 16
  %v434 = vadd.s32 %v433, %v431
  %v435 = vand.u32 %v412, 65535
  %v436 = vshra.s32 %v412, 16
  %v437 = vcvt.s32.f32 %v435
  %v438 = vcvt.s32.f32 %v436
  %439 = vmin.xlane.f32.xlu0 %v438
  %v440 = vpop.xlane.xlu0 %439
  %vm441 = vcmp.eq.f32.partialorder %v438, %v440
  %v442 = vsel %vm441, %v437, inf
  %443 = vmin.xlane.f32.xlu0 %v442
  %v444 = vpop.xlane.xlu0 %443
  %v445 = vcvt.f32.s32 %v444
  %v446 = vcvt.f32.s32 %v440
  %v447 = vshll.u32 %v446, 16
  %v448 = vadd.s32 %v447, %v445
  %vm449 = vcmp.lt.s32.totalorder %v417, %v418
  %v450 = vsel %vm449, %v417, %v418
  %v451 = vand.u32 %v450, 65535
  %v452 = vshra.s32 %v450, 16
  %v453 = vcvt.s32.f32 %v451
  %v454 = vcvt.s32.f32 %v452
  %455 = vmin.xlane.f32.xlu0 %v454
  %v456 = vpop.xlane.xlu0 %455
  %vm457 = vcmp.eq.f32.partialorder %v454, %v456
  %v458 = vsel %vm457, %v453, inf
  %459 = vmin.xlane.f32.xlu0 %v458
  %v460 = vpop.xlane.xlu0 %459
  %v461 = vcvt.f32.s32 %v460
  %v462 = vcvt.f32.s32 %v456
  %v463 = vshll.u32 %v462, 16
  %v464 = vadd.s32 %v463, %v461
  %vm465 = vcmp.lt.s32.totalorder %v419, %v420
  %v466 = vsel %vm465, %v419, %v420
  %v467 = vand.u32 %v466, 65535
  %v468 = vshra.s32 %v466, 16
  %v469 = vcvt.s32.f32 %v467
  %v470 = vcvt.s32.f32 %v468
  %471 = vmin.xlane.f32.xlu0 %v470
  %v472 = vpop.xlane.xlu0 %471
  %vm473 = vcmp.eq.f32.partialorder %v470, %v472
  %v474 = vsel %vm473, %v469, inf
  %475 = vmin.xlane.f32.xlu0 %v474
  %v476 = vpop.xlane.xlu0 %475
  %v477 = vcvt.f32.s32 %v476
  %v478 = vcvt.f32.s32 %v472
  %v479 = vshll.u32 %v478, 16
  %v480 = vadd.s32 %v479, %v477
  %vm481 = vcmp.lt.s32.totalorder %v434, %v464
  %v482 = vsel %vm481, %v434, %v464
  %vm483 = vcmp.lt.s32.totalorder %v448, %v480
  %v484 = vsel %vm483, %v448, %v480
  %vm485 = vcmp.eq.s32.totalorder %v237, 2
  %v486 = vsel %vm485, %v482, %v407
  %v487 = vsel %vm485, %v484, %v408
  %vm488 = vcmp.eq.s32.totalorder %v411, %v482
  %vm489 = vcmp.eq.s32.totalorder %v412, %v484
  %v490 = vsel %vm488, 2147483647, %v411
  %v491 = vsel %vm489, 2147483647, %v412
  %vm492 = vcmp.eq.s32.totalorder %v417, %v482
  %vm493 = vcmp.eq.s32.totalorder %v418, %v482
  %vm494 = vcmp.eq.s32.totalorder %v419, %v484
  %vm495 = vcmp.eq.s32.totalorder %v420, %v484
  %v496 = vsel %vm492, 2147483647, %v417
  %v497 = vsel %vm493, 2147483647, %v418
  %v498 = vsel %vm494, 2147483647, %v419
  %v499 = vsel %vm495, 2147483647, %v420
  %v500 = vand.u32 %v490, 65535
  %v501 = vshra.s32 %v490, 16
  %v502 = vcvt.s32.f32 %v500
  %v503 = vcvt.s32.f32 %v501
  %504 = vmin.xlane.f32.xlu0 %v503
  %v505 = vpop.xlane.xlu0 %504
  %vm506 = vcmp.eq.f32.partialorder %v503, %v505
  %v507 = vsel %vm506, %v502, inf
  %508 = vmin.xlane.f32.xlu0 %v507
  %v509 = vpop.xlane.xlu0 %508
  %v510 = vcvt.f32.s32 %v509
  %v511 = vcvt.f32.s32 %v505
  %v512 = vshll.u32 %v511, 16
  %v513 = vadd.s32 %v512, %v510
  %v514 = vand.u32 %v491, 65535
  %v515 = vshra.s32 %v491, 16
  %v516 = vcvt.s32.f32 %v514
  %v517 = vcvt.s32.f32 %v515
  %518 = vmin.xlane.f32.xlu0 %v517
  %v519 = vpop.xlane.xlu0 %518
  %vm520 = vcmp.eq.f32.partialorder %v517, %v519
  %v521 = vsel %vm520, %v516, inf
  %522 = vmin.xlane.f32.xlu0 %v521
  %v523 = vpop.xlane.xlu0 %522
  %v524 = vcvt.f32.s32 %v523
  %v525 = vcvt.f32.s32 %v519
  %v526 = vshll.u32 %v525, 16
  %v527 = vadd.s32 %v526, %v524
  %vm528 = vcmp.lt.s32.totalorder %v496, %v497
  %v529 = vsel %vm528, %v496, %v497
  %v530 = vand.u32 %v529, 65535
  %v531 = vshra.s32 %v529, 16
  %v532 = vcvt.s32.f32 %v530
  %v533 = vcvt.s32.f32 %v531
  %534 = vmin.xlane.f32.xlu0 %v533
  %v535 = vpop.xlane.xlu0 %534
  %vm536 = vcmp.eq.f32.partialorder %v533, %v535
  %v537 = vsel %vm536, %v532, inf
  %538 = vmin.xlane.f32.xlu0 %v537
  %v539 = vpop.xlane.xlu0 %538
  %v540 = vcvt.f32.s32 %v539
  %v541 = vcvt.f32.s32 %v535
  %v542 = vshll.u32 %v541, 16
  %v543 = vadd.s32 %v542, %v540
  %vm544 = vcmp.lt.s32.totalorder %v498, %v499
  %v545 = vsel %vm544, %v498, %v499
  %v546 = vand.u32 %v545, 65535
  %v547 = vshra.s32 %v545, 16
  %v548 = vcvt.s32.f32 %v546
  %v549 = vcvt.s32.f32 %v547
  %550 = vmin.xlane.f32.xlu0 %v549
  %v551 = vpop.xlane.xlu0 %550
  %vm552 = vcmp.eq.f32.partialorder %v549, %v551
  %v553 = vsel %vm552, %v548, inf
  %554 = vmin.xlane.f32.xlu0 %v553
  %v555 = vpop.xlane.xlu0 %554
  %v556 = vcvt.f32.s32 %v555
  %v557 = vcvt.f32.s32 %v551
  %v558 = vshll.u32 %v557, 16
  %v559 = vadd.s32 %v558, %v556
  %vm560 = vcmp.lt.s32.totalorder %v513, %v543
  %v561 = vsel %vm560, %v513, %v543
  %vm562 = vcmp.lt.s32.totalorder %v527, %v559
  %v563 = vsel %vm562, %v527, %v559
  %vm564 = vcmp.eq.s32.totalorder %v237, 3
  %v565 = vsel %vm564, %v561, %v486
  %v566 = vsel %vm564, %v563, %v487
  %vm567 = vcmp.eq.s32.totalorder %v490, %v561
  %vm568 = vcmp.eq.s32.totalorder %v491, %v563
  %v569 = vsel %vm567, 2147483647, %v490
  %v570 = vsel %vm568, 2147483647, %v491
  %vm571 = vcmp.eq.s32.totalorder %v496, %v561
  %vm572 = vcmp.eq.s32.totalorder %v497, %v561
  %vm573 = vcmp.eq.s32.totalorder %v498, %v563
  %vm574 = vcmp.eq.s32.totalorder %v499, %v563
  %v575 = vsel %vm571, 2147483647, %v496
  %v576 = vsel %vm572, 2147483647, %v497
  %v577 = vsel %vm573, 2147483647, %v498
  %v578 = vsel %vm574, 2147483647, %v499
  %v579 = vand.u32 %v569, 65535
  %v580 = vshra.s32 %v569, 16
  %v581 = vcvt.s32.f32 %v579
  %v582 = vcvt.s32.f32 %v580
  %583 = vmin.xlane.f32.xlu0 %v582
  %v584 = vpop.xlane.xlu0 %583
  %vm585 = vcmp.eq.f32.partialorder %v582, %v584
  %v586 = vsel %vm585, %v581, inf
  %587 = vmin.xlane.f32.xlu0 %v586
  %v588 = vpop.xlane.xlu0 %587
  %v589 = vcvt.f32.s32 %v588
  %v590 = vcvt.f32.s32 %v584
  %v591 = vshll.u32 %v590, 16
  %v592 = vadd.s32 %v591, %v589
  %v593 = vand.u32 %v570, 65535
  %v594 = vshra.s32 %v570, 16
  %v595 = vcvt.s32.f32 %v593
  %v596 = vcvt.s32.f32 %v594
  %597 = vmin.xlane.f32.xlu0 %v596
  %v598 = vpop.xlane.xlu0 %597
  %vm599 = vcmp.eq.f32.partialorder %v596, %v598
  %v600 = vsel %vm599, %v595, inf
  %601 = vmin.xlane.f32.xlu0 %v600
  %v602 = vpop.xlane.xlu0 %601
  %v603 = vcvt.f32.s32 %v602
  %v604 = vcvt.f32.s32 %v598
  %v605 = vshll.u32 %v604, 16
  %v606 = vadd.s32 %v605, %v603
  %vm607 = vcmp.lt.s32.totalorder %v575, %v576
  %v608 = vsel %vm607, %v575, %v576
  %v609 = vand.u32 %v608, 65535
  %v610 = vshra.s32 %v608, 16
  %v611 = vcvt.s32.f32 %v609
  %v612 = vcvt.s32.f32 %v610
  %613 = vmin.xlane.f32.xlu0 %v612
  %v614 = vpop.xlane.xlu0 %613
  %vm615 = vcmp.eq.f32.partialorder %v612, %v614
  %v616 = vsel %vm615, %v611, inf
  %617 = vmin.xlane.f32.xlu0 %v616
  %v618 = vpop.xlane.xlu0 %617
  %v619 = vcvt.f32.s32 %v618
  %v620 = vcvt.f32.s32 %v614
  %v621 = vshll.u32 %v620, 16
  %v622 = vadd.s32 %v621, %v619
  %vm623 = vcmp.lt.s32.totalorder %v577, %v578
  %v624 = vsel %vm623, %v577, %v578
  %v625 = vand.u32 %v624, 65535
  %v626 = vshra.s32 %v624, 16
  %v627 = vcvt.s32.f32 %v625
  %v628 = vcvt.s32.f32 %v626
  %629 = vmin.xlane.f32.xlu0 %v628
  %v630 = vpop.xlane.xlu0 %629
  %vm631 = vcmp.eq.f32.partialorder %v628, %v630
  %v632 = vsel %vm631, %v627, inf
  %633 = vmin.xlane.f32.xlu0 %v632
  %v634 = vpop.xlane.xlu0 %633
  %v635 = vcvt.f32.s32 %v634
  %v636 = vcvt.f32.s32 %v630
  %v637 = vshll.u32 %v636, 16
  %v638 = vadd.s32 %v637, %v635
  %vm639 = vcmp.lt.s32.totalorder %v592, %v622
  %v640 = vsel %vm639, %v592, %v622
  %vm641 = vcmp.lt.s32.totalorder %v606, %v638
  %v642 = vsel %vm641, %v606, %v638
  %vm643 = vcmp.eq.s32.totalorder %v237, 4
  %v644 = vsel %vm643, %v640, %v565
  %v645 = vsel %vm643, %v642, %v566
  %vm646 = vcmp.eq.s32.totalorder %v569, %v640
  %vm647 = vcmp.eq.s32.totalorder %v570, %v642
  %v648 = vsel %vm646, 2147483647, %v569
  %v649 = vsel %vm647, 2147483647, %v570
  %vm650 = vcmp.eq.s32.totalorder %v575, %v640
  %vm651 = vcmp.eq.s32.totalorder %v576, %v640
  %vm652 = vcmp.eq.s32.totalorder %v577, %v642
  %vm653 = vcmp.eq.s32.totalorder %v578, %v642
  %v654 = vsel %vm650, 2147483647, %v575
  %v655 = vsel %vm651, 2147483647, %v576
  %v656 = vsel %vm652, 2147483647, %v577
  %v657 = vsel %vm653, 2147483647, %v578
  %v658 = vand.u32 %v648, 65535
  %v659 = vshra.s32 %v648, 16
  %v660 = vcvt.s32.f32 %v658
  %v661 = vcvt.s32.f32 %v659
  %662 = vmin.xlane.f32.xlu0 %v661
  %v663 = vpop.xlane.xlu0 %662
  %vm664 = vcmp.eq.f32.partialorder %v661, %v663
  %v665 = vsel %vm664, %v660, inf
  %666 = vmin.xlane.f32.xlu0 %v665
  %v667 = vpop.xlane.xlu0 %666
  %v668 = vcvt.f32.s32 %v667
  %v669 = vcvt.f32.s32 %v663
  %v670 = vshll.u32 %v669, 16
  %v671 = vadd.s32 %v670, %v668
  %v672 = vand.u32 %v649, 65535
  %v673 = vshra.s32 %v649, 16
  %v674 = vcvt.s32.f32 %v672
  %v675 = vcvt.s32.f32 %v673
  %676 = vmin.xlane.f32.xlu0 %v675
  %v677 = vpop.xlane.xlu0 %676
  %vm678 = vcmp.eq.f32.partialorder %v675, %v677
  %v679 = vsel %vm678, %v674, inf
  %680 = vmin.xlane.f32.xlu0 %v679
  %v681 = vpop.xlane.xlu0 %680
  %v682 = vcvt.f32.s32 %v681
  %v683 = vcvt.f32.s32 %v677
  %v684 = vshll.u32 %v683, 16
  %v685 = vadd.s32 %v684, %v682
  %vm686 = vcmp.lt.s32.totalorder %v654, %v655
  %v687 = vsel %vm686, %v654, %v655
  %v688 = vand.u32 %v687, 65535
  %v689 = vshra.s32 %v687, 16
  %v690 = vcvt.s32.f32 %v688
  %v691 = vcvt.s32.f32 %v689
  %692 = vmin.xlane.f32.xlu0 %v691
  %v693 = vpop.xlane.xlu0 %692
  %vm694 = vcmp.eq.f32.partialorder %v691, %v693
  %v695 = vsel %vm694, %v690, inf
  %696 = vmin.xlane.f32.xlu0 %v695
  %v697 = vpop.xlane.xlu0 %696
  %v698 = vcvt.f32.s32 %v697
  %v699 = vcvt.f32.s32 %v693
  %v700 = vshll.u32 %v699, 16
  %v701 = vadd.s32 %v700, %v698
  %vm702 = vcmp.lt.s32.totalorder %v656, %v657
  %v703 = vsel %vm702, %v656, %v657
  %v704 = vand.u32 %v703, 65535
  %v705 = vshra.s32 %v703, 16
  %v706 = vcvt.s32.f32 %v704
  %v707 = vcvt.s32.f32 %v705
  %708 = vmin.xlane.f32.xlu0 %v707
  %v709 = vpop.xlane.xlu0 %708
  %vm710 = vcmp.eq.f32.partialorder %v707, %v709
  %v711 = vsel %vm710, %v706, inf
  %712 = vmin.xlane.f32.xlu0 %v711
  %v713 = vpop.xlane.xlu0 %712
  %v714 = vcvt.f32.s32 %v713
  %v715 = vcvt.f32.s32 %v709
  %v716 = vshll.u32 %v715, 16
  %v717 = vadd.s32 %v716, %v714
  %vm718 = vcmp.lt.s32.totalorder %v671, %v701
  %v719 = vsel %vm718, %v671, %v701
  %vm720 = vcmp.lt.s32.totalorder %v685, %v717
  %v721 = vsel %vm720, %v685, %v717
  %vm722 = vcmp.eq.s32.totalorder %v237, 5
  %v723 = vsel %vm722, %v719, %v644
  %v724 = vsel %vm722, %v721, %v645
  %vm725 = vcmp.eq.s32.totalorder %v648, %v719
  %vm726 = vcmp.eq.s32.totalorder %v649, %v721
  %v727 = vsel %vm725, 2147483647, %v648
  %v728 = vsel %vm726, 2147483647, %v649
  %vm729 = vcmp.eq.s32.totalorder %v654, %v719
  %vm730 = vcmp.eq.s32.totalorder %v655, %v719
  %vm731 = vcmp.eq.s32.totalorder %v656, %v721
  %vm732 = vcmp.eq.s32.totalorder %v657, %v721
  %v733 = vsel %vm729, 2147483647, %v654
  %v734 = vsel %vm730, 2147483647, %v655
  %v735 = vsel %vm731, 2147483647, %v656
  %v736 = vsel %vm732, 2147483647, %v657
  %v737 = vand.u32 %v727, 65535
  %v738 = vshra.s32 %v727, 16
  %v739 = vcvt.s32.f32 %v737
  %v740 = vcvt.s32.f32 %v738
  %741 = vmin.xlane.f32.xlu0 %v740
  %v742 = vpop.xlane.xlu0 %741
  %vm743 = vcmp.eq.f32.partialorder %v740, %v742
  %v744 = vsel %vm743, %v739, inf
  %745 = vmin.xlane.f32.xlu0 %v744
  %v746 = vpop.xlane.xlu0 %745
  %v747 = vcvt.f32.s32 %v746
  %v748 = vcvt.f32.s32 %v742
  %v749 = vshll.u32 %v748, 16
  %v750 = vadd.s32 %v749, %v747
  %v751 = vand.u32 %v728, 65535
  %v752 = vshra.s32 %v728, 16
  %v753 = vcvt.s32.f32 %v751
  %v754 = vcvt.s32.f32 %v752
  %755 = vmin.xlane.f32.xlu0 %v754
  %v756 = vpop.xlane.xlu0 %755
  %vm757 = vcmp.eq.f32.partialorder %v754, %v756
  %v758 = vsel %vm757, %v753, inf
  %759 = vmin.xlane.f32.xlu0 %v758
  %v760 = vpop.xlane.xlu0 %759
  %v761 = vcvt.f32.s32 %v760
  %v762 = vcvt.f32.s32 %v756
  %v763 = vshll.u32 %v762, 16
  %v764 = vadd.s32 %v763, %v761
  %vm765 = vcmp.lt.s32.totalorder %v733, %v734
  %v766 = vsel %vm765, %v733, %v734
  %v767 = vand.u32 %v766, 65535
  %v768 = vshra.s32 %v766, 16
  %v769 = vcvt.s32.f32 %v767
  %v770 = vcvt.s32.f32 %v768
  %771 = vmin.xlane.f32.xlu0 %v770
  %v772 = vpop.xlane.xlu0 %771
  %vm773 = vcmp.eq.f32.partialorder %v770, %v772
  %v774 = vsel %vm773, %v769, inf
  %775 = vmin.xlane.f32.xlu0 %v774
  %v776 = vpop.xlane.xlu0 %775
  %v777 = vcvt.f32.s32 %v776
  %v778 = vcvt.f32.s32 %v772
  %v779 = vshll.u32 %v778, 16
  %v780 = vadd.s32 %v779, %v777
  %vm781 = vcmp.lt.s32.totalorder %v735, %v736
  %v782 = vsel %vm781, %v735, %v736
  %v783 = vand.u32 %v782, 65535
  %v784 = vshra.s32 %v782, 16
  %v785 = vcvt.s32.f32 %v783
  %v786 = vcvt.s32.f32 %v784
  %787 = vmin.xlane.f32.xlu0 %v786
  %v788 = vpop.xlane.xlu0 %787
  %vm789 = vcmp.eq.f32.partialorder %v786, %v788
  %v790 = vsel %vm789, %v785, inf
  %791 = vmin.xlane.f32.xlu0 %v790
  %v792 = vpop.xlane.xlu0 %791
  %v793 = vcvt.f32.s32 %v792
  %v794 = vcvt.f32.s32 %v788
  %v795 = vshll.u32 %v794, 16
  %v796 = vadd.s32 %v795, %v793
  %vm797 = vcmp.lt.s32.totalorder %v750, %v780
  %v798 = vsel %vm797, %v750, %v780
  %vm799 = vcmp.lt.s32.totalorder %v764, %v796
  %v800 = vsel %vm799, %v764, %v796
  %vm801 = vcmp.eq.s32.totalorder %v237, 6
  %v802 = vsel %vm801, %v798, %v723
  %v803 = vsel %vm801, %v800, %v724
  %vm804 = vcmp.eq.s32.totalorder %v727, %v798
  %vm805 = vcmp.eq.s32.totalorder %v728, %v800
  %v806 = vsel %vm804, 2147483647, %v727
  %v807 = vsel %vm805, 2147483647, %v728
  %vm808 = vcmp.eq.s32.totalorder %v733, %v798
  %vm809 = vcmp.eq.s32.totalorder %v734, %v798
  %vm810 = vcmp.eq.s32.totalorder %v735, %v800
  %vm811 = vcmp.eq.s32.totalorder %v736, %v800
  %v812 = vsel %vm808, 2147483647, %v733
  %v813 = vsel %vm809, 2147483647, %v734
  %v814 = vsel %vm810, 2147483647, %v735
  %v815 = vsel %vm811, 2147483647, %v736
  %v816 = vand.u32 %v806, 65535
  %v817 = vshra.s32 %v806, 16
  %v818 = vcvt.s32.f32 %v816
  %v819 = vcvt.s32.f32 %v817
  %820 = vmin.xlane.f32.xlu0 %v819
  %v821 = vpop.xlane.xlu0 %820
  %vm822 = vcmp.eq.f32.partialorder %v819, %v821
  %v823 = vsel %vm822, %v818, inf
  %824 = vmin.xlane.f32.xlu0 %v823
  %v825 = vpop.xlane.xlu0 %824
  %v826 = vcvt.f32.s32 %v825
  %v827 = vcvt.f32.s32 %v821
  %v828 = vshll.u32 %v827, 16
  %v829 = vadd.s32 %v828, %v826
  %v830 = vand.u32 %v807, 65535
  %v831 = vshra.s32 %v807, 16
  %v832 = vcvt.s32.f32 %v830
  %v833 = vcvt.s32.f32 %v831
  %834 = vmin.xlane.f32.xlu0 %v833
  %v835 = vpop.xlane.xlu0 %834
  %vm836 = vcmp.eq.f32.partialorder %v833, %v835
  %v837 = vsel %vm836, %v832, inf
  %838 = vmin.xlane.f32.xlu0 %v837
  %v839 = vpop.xlane.xlu0 %838
  %v840 = vcvt.f32.s32 %v839
  %v841 = vcvt.f32.s32 %v835
  %v842 = vshll.u32 %v841, 16
  %v843 = vadd.s32 %v842, %v840
  %vm844 = vcmp.lt.s32.totalorder %v812, %v813
  %v845 = vsel %vm844, %v812, %v813
  %v846 = vand.u32 %v845, 65535
  %v847 = vshra.s32 %v845, 16
  %v848 = vcvt.s32.f32 %v846
  %v849 = vcvt.s32.f32 %v847
  %850 = vmin.xlane.f32.xlu0 %v849
  %v851 = vpop.xlane.xlu0 %850
  %vm852 = vcmp.eq.f32.partialorder %v849, %v851
  %v853 = vsel %vm852, %v848, inf
  %854 = vmin.xlane.f32.xlu0 %v853
  %v855 = vpop.xlane.xlu0 %854
  %v856 = vcvt.f32.s32 %v855
  %v857 = vcvt.f32.s32 %v851
  %v858 = vshll.u32 %v857, 16
  %v859 = vadd.s32 %v858, %v856
  %vm860 = vcmp.lt.s32.totalorder %v814, %v815
  %v861 = vsel %vm860, %v814, %v815
  %v862 = vand.u32 %v861, 65535
  %v863 = vshra.s32 %v861, 16
  %v864 = vcvt.s32.f32 %v862
  %v865 = vcvt.s32.f32 %v863
  %866 = vmin.xlane.f32.xlu0 %v865
  %v867 = vpop.xlane.xlu0 %866
  %vm868 = vcmp.eq.f32.partialorder %v865, %v867
  %v869 = vsel %vm868, %v864, inf
  %870 = vmin.xlane.f32.xlu0 %v869
  %v871 = vpop.xlane.xlu0 %870
  %v872 = vcvt.f32.s32 %v871
  %v873 = vcvt.f32.s32 %v867
  %v874 = vshll.u32 %v873, 16
  %v875 = vadd.s32 %v874, %v872
  %vm876 = vcmp.lt.s32.totalorder %v829, %v859
  %v877 = vsel %vm876, %v829, %v859
  %vm878 = vcmp.lt.s32.totalorder %v843, %v875
  %v879 = vsel %vm878, %v843, %v875
  %vm880 = vcmp.eq.s32.totalorder %v237, 7
  %v881 = vsel %vm880, %v877, %v802
  %v882 = vsel %vm880, %v879, %v803
  %883 = vst [vmem:[#allocation2] sm:$0xff] %v881
  %884 = vst [vmem:[#allocation2 + $0x8] sm:$0xff] %v882
  // Predicated region
  $region14: #{_mean_precision_at_r.1} parent=0 // pred_check
    %p885 = pneg %p12
  $region15: #{_mean_precision_at_r.1} parent=0 // pred_check_branch
    %887 = sbr.rel (%p885) target = $region17
  $region16: #{_mean_precision_at_r.1} parent=0 // pred_region
    %888 = vst [vmem:[%s2] sm:$0xff] %v881
    %889 = vst [vmem:[%s2 + $0x8] sm:$0xff] %v882
  $region17: #{_mean_precision_at_r.1} parent=0 // pred_fallthru
    _
  // Predicated region
  $region18: #{_mean_precision_at_r.1} parent=0 // pred_check
    _
  $region19: #{_mean_precision_at_r.1} parent=0 // pred_check_branch
    %891 = sbr.rel (0) target = $region21
  $region20: #{_mean_precision_at_r.1} parent=0 // pred_region
    _
  $region21: #{_mean_precision_at_r.1} parent=0 // pred_fallthru
    _
  // Predicated region
  $region22: #{_mean_precision_at_r.1} parent=0 // pred_check
    _
  $region23: #{_mean_precision_at_r.1} parent=0 // pred_check_branch
    %893 = sbr.rel (0) target = $region25
  $region24: #{_mean_precision_at_r.1} parent=0 // pred_region
    _
  $region25: #{_mean_precision_at_r.1} parent=0 // pred_fallthru
    _

</llo_original>
